<compile_context>
chip_gen: v7x
topology: tpu7x:2x2x1
jax: 0.10.0
libtpu: 0.0.40
codegen_flags: <defaults>
</compile_context>

<pallas_src>
import functools

import jax
import jax.numpy as jnp
from jax import lax
from jax.experimental import pallas as pl
from jax.experimental.pallas import tpu as pltpu


def _round_up(x, m):
    return ((x + m - 1) // m) * m


def _mmd_tile_kernel(nib_ref, row_ref, col_ref, sqr_ref, sqc_ref,
                     wr_ref, wc_ref, out_ref, acc_ref, *,
                     kernel_mul, kernel_num):
    """One (tile x tile) block of the pairwise RBF-kernel matrix.

    Grid = (row blocks [parallel], col blocks [arbitrary, innermost]).
    Only blocks with j >= i compute (symmetry); off-diagonal blocks count x2.
    acc_ref (tile,1) accumulates K @ w_col over j; at j == last the row-weighted
    scalar partial for row block i is written to its (8,128) output block.
    """
    i = pl.program_id(0)                 # row block (parallel)
    j = pl.program_id(1)                 # col block (reduction, innermost)
    last_j = pl.num_programs(1) - 1

    # First compute-bearing step of this row block: zero the accumulator.
    @pl.when(j == i)
    def _init():
        acc_ref[...] = jnp.zeros_like(acc_ref)

    @pl.when(j >= i)
    def _compute():
        dims = (((1,), (1,)), ((), ()))
        # Gram block on the MXU (no transposes); inputs may be bf16 or f32.
        gram = lax.dot_general(row_ref[...], col_ref[...], dims,
                               preferred_element_type=jnp.float32)      # (T,T)
        l2 = jnp.maximum(sqr_ref[...] + sqc_ref[...] - 2.0 * gram, 0.0)

        # Sum of RBF kernels. nib_ref[0, k] = -1 / bandwidth_k (SMEM scalars).
        if kernel_mul == 2.0:
            # One exp at the largest bandwidth; the rest by repeated squaring.
            v = jnp.exp(l2 * nib_ref[0, kernel_num - 1])
            kern = v
            p = v
            for _ in range(kernel_num - 1):
                p = p * p
                kern = kern + p
        else:
            kern = jnp.exp(l2 * nib_ref[0, 0])
            for k in range(1, kernel_num):
                kern = kern + jnp.exp(l2 * nib_ref[0, k])

        # Signed column reduction on the (otherwise idle) MXU:
        # (T,T) x (1,T) contracted on dim 1 -> (T,1).
        cv = lax.dot_general(kern, wc_ref[...], dims,
                             preferred_element_type=jnp.float32)
        factor = jnp.where(j > i, 2.0, 1.0)          # symmetry: off-diag x2
        acc_ref[...] = acc_ref[...] + factor * cv

    # Last column block of this row: row-weighted reduce, write the partial.
    @pl.when(j == last_j)
    def _finalize():
        s = jnp.sum(wr_ref[...] * acc_ref[...])      # scalar partial for row i
        out_ref[...] = jnp.zeros_like(out_ref) + s   # fill the (8,128) block


def mmd_loss(source, target, kernel_mul=2.0, kernel_num=5, tile=256):
    """Pallas TPU implementation of MMDLoss.forward (rbf, fix_sigma=None).

    tile=256 default; on v6e with small/moderate D, tile=512 amortizes the
    per-step overhead further (128 MiB VMEM easily holds it).
    """
    assert source.ndim == 2 and target.ndim == 2
    assert source.shape[1] == target.shape[1]
    kernel_mul = float(kernel_mul)
    kernel_num = int(kernel_num)
    assert kernel_num >= 1

    bs, d = int(source.shape[0]), int(source.shape[1])
    bt = int(target.shape[0])
    n = bs + bt
    f32 = jnp.float32

    total = jnp.concatenate([source, target], axis=0).astype(f32)
    # Pairwise distances are translation invariant; centering avoids
    # catastrophic cancellation in the closed-form bandwidth sum below.
    total_c = total - jnp.mean(total, axis=0, keepdims=True)

    # Keep the streamed tiles in bf16 when both inputs are bf16 (half the DMA
    # bytes / VMEM footprint); all arithmetic stays f32 via the MXU accumulate.
    store_dtype = (jnp.bfloat16
                   if (source.dtype == jnp.bfloat16 and target.dtype == jnp.bfloat16)
                   else f32)
    total_s = total_c.astype(store_dtype)
    total_f = total_s.astype(f32)                 # what the kernel effectively sees

    # Row squared norms (reused by the kernel) and closed-form bandwidth:
    # sum_{i,j} ||x_i - x_j||^2 = 2*N*sum_i ||x_i||^2 - 2*||sum_i x_i||^2.
    sq = jnp.sum(total_f * total_f, axis=1)                        # (N,)
    colsum = jnp.sum(total_f, axis=0)                              # (D,)
    l2_sum = 2.0 * n * jnp.sum(sq) - 2.0 * jnp.dot(colsum, colsum)
    bandwidth = l2_sum / float(n * n - n)
    bandwidth = bandwidth / (kernel_mul ** (kernel_num // 2))
    bw_list = [bandwidth * (kernel_mul ** k) for k in range(kernel_num)]
    neg_inv_bw = (-1.0 / jnp.stack(bw_list)).reshape(1, kernel_num).astype(f32)

    # Signed per-sample weights with the quadrant means folded in:
    # loss = sum_{i,j} w_i * w_j * K_ij  with  w = [+1/bs]*bs ++ [-1/bt]*bt.
    w = jnp.concatenate([jnp.full((bs,), 1.0 / bs, f32),
                         jnp.full((bt,), -1.0 / bt, f32)])

    # --- tile sizing (respects the (8,128) BlockSpec layout constraints) -----
    tile = int(tile)
    n_pad8 = _round_up(n, 8)
    if tile >= n_pad8:
        tile = n_pad8                              # single block per axis
    else:
        tile = max(128, _round_up(tile, 128))      # lane-aligned (1, tile) blocks
        if tile >= n_pad8:
            tile = n_pad8
    n_pad = _round_up(n, tile)
    t_grid = n_pad // tile
    pad = n_pad - n

    total_p = jnp.pad(total_s, ((0, pad), (0, 0))) if pad else total_s
    sq_p = jnp.pad(sq, (0, pad)) if pad else sq
    w_p = jnp.pad(w, (0, pad)) if pad else w       # padded rows/cols get weight 0

    sq_row = sq_p.reshape(n_pad, 1)                # (tile,1) blocks
    sq_col = sq_p.reshape(1, n_pad)                # (1,tile) blocks
    w_row = w_p.reshape(n_pad, 1)
    w_col = w_p.reshape(1, n_pad)

    kernel = functools.partial(_mmd_tile_kernel,
                               kernel_mul=kernel_mul, kernel_num=kernel_num)

    itemsize = jnp.dtype(store_dtype).itemsize
    cost = pl.CostEstimate(
        flops=int(2 * n_pad * n_pad * (d + 2)),
        transcendentals=int(n_pad * n_pad * (1 if kernel_mul == 2.0 else kernel_num)),
        bytes_accessed=int(t_grid * t_grid * 2 * tile * d * itemsize
                           + 2 * n_pad * d * itemsize),
    )

    out = pl.pallas_call(
        kernel,
        out_shape=jax.ShapeDtypeStruct((8 * t_grid, 128), f32),
        grid=(t_grid, t_grid),
        in_specs=[
            pl.BlockSpec((1, kernel_num), lambda i, j: (0, 0),
                         memory_space=pltpu.MemorySpace.SMEM),        # -1/bw_k
            pl.BlockSpec((tile, d), lambda i, j: (i, 0)),             # row tile
            pl.BlockSpec((tile, d), lambda i, j: (j, 0)),             # col tile
            pl.BlockSpec((tile, 1), lambda i, j: (i, 0)),             # ||row||^2
            pl.BlockSpec((1, tile), lambda i, j: (0, j)),             # ||col||^2
            pl.BlockSpec((tile, 1), lambda i, j: (i, 0)),             # row weights
            pl.BlockSpec((1, tile), lambda i, j: (0, j)),             # col weights
        ],
        out_specs=pl.BlockSpec((8, 128), lambda i, j: (i, 0)),        # row partials
        scratch_shapes=[pltpu.VMEM((tile, 1), jnp.float32)],
        compiler_params=pltpu.CompilerParams(
            dimension_semantics=("parallel", "arbitrary"),
            vmem_limit_bytes=64 * 1024 * 1024),
        cost_estimate=cost,
    )(neg_inv_bw, total_p, total_p, sq_row, sq_col, w_row, w_col)

    # Each (8,128) output block is filled with its row block's scalar partial.
    partials = out.reshape(t_grid, 8 * 128)[:, 0]
    return jnp.sum(partials)


def _mmd_loss_ref(source, target, kernel_mul=2.0, kernel_num=5):
    """Pure-JAX reference mirroring the PyTorch module exactly."""
    b = source.shape[0]
    total = jnp.concatenate([source, target], axis=0).astype(jnp.float32)
    n = total.shape[0]
    diff = total[None, :, :] - total[:, None, :]
    l2 = jnp.sum(diff * diff, axis=2)
    bandwidth = jnp.sum(l2) / float(n * n - n)
    bandwidth = bandwidth / (kernel_mul ** (kernel_num // 2))
    kernels = sum(jnp.exp(-l2 / (bandwidth * kernel_mul ** i)) for i in range(kernel_num))
    xx = jnp.mean(kernels[:b, :b])
    yy = jnp.mean(kernels[b:, b:])
    xy = jnp.mean(kernels[:b, b:])
    yx = jnp.mean(kernels[b:, :b])
    return xx + yy - xy - yx


if __name__ == "__main__":
    key = jax.random.PRNGKey(0)
    k1, k2, k3, k4 = jax.random.split(key, 4)

    # Case 1: tiny single-block problem (tile collapses to N=16).
    B, D = 8, 32
    src = jax.random.normal(k1, (B, D), dtype=jnp.float32)
    tgt = jax.random.normal(k2, (B, D), dtype=jnp.float32) + 0.5
    loss = jax.block_until_ready(mmd_loss(src, tgt))
    ref = jax.block_until_ready(_mmd_loss_ref(src, tgt))
    assert jnp.allclose(loss, ref, rtol=2e-3, atol=1e-4), (loss, ref)

    # Case 2: multi-block grid with padding, symmetry gating and per-row
    # partials exercised (N=160, tile=128 -> 2x2 block grid, rows 160..255 pad).
    B2, D2 = 80, 32
    src2 = jax.random.normal(k3, (B2, D2), dtype=jnp.float32)
    tgt2 = jax.random.normal(k4, (B2, D2), dtype=jnp.float32) + 0.3
    loss2 = jax.block_until_ready(mmd_loss(src2, tgt2, tile=128))
    ref2 = jax.block_until_ready(_mmd_loss_ref(src2, tgt2))
    assert jnp.allclose(loss2, ref2, rtol=2e-3, atol=1e-4), (loss2, ref2)

    print("KERNEL_OK")
</pallas_src>

<mosaic_0001>
module attributes {stable_mosaic.version = 11 : i64} {
  func.func @_mmd_tile_kernel(%arg0: i32, %arg1: i32, %arg2: memref<1x5xf32, #tpu.memory_space<smem>>, %arg3: memref<16x32xf32, #tpu.memory_space<vmem>>, %arg4: memref<16x32xf32, #tpu.memory_space<vmem>>, %arg5: memref<16x1xf32, #tpu.memory_space<vmem>>, %arg6: memref<1x16xf32, #tpu.memory_space<vmem>>, %arg7: memref<16x1xf32, #tpu.memory_space<vmem>>, %arg8: memref<1x16xf32, #tpu.memory_space<vmem>>, %arg9: memref<8x128xf32, #tpu.memory_space<vmem>>, %arg10: memref<16x1xf32, #tpu.memory_space<vmem>>) attributes {dimension_semantics = [#tpu.dimension_semantics<parallel>, #tpu.dimension_semantics<arbitrary>], iteration_bounds = array<i64: 1, 1>, scalar_prefetch = 0 : i64, scratch_operands = 1 : i64, tpu.core_type = #tpu.core_type<tc>, window_params = [{transform_indices = @transform_0, window_bounds = array<i64: 1, 5>}, {transform_indices = @transform_1, window_bounds = array<i64: 16, 32>}, {transform_indices = @transform_2, window_bounds = array<i64: 16, 32>}, {transform_indices = @transform_3, window_bounds = array<i64: 16, 1>}, {transform_indices = @transform_4, window_bounds = array<i64: 1, 16>}, {transform_indices = @transform_5, window_bounds = array<i64: 16, 1>}, {transform_indices = @transform_6, window_bounds = array<i64: 1, 16>}, {transform_indices = @transform_7, window_bounds = array<i64: 8, 128>}]} {
    %0 = arith.cmpi eq, %arg1, %arg0 : i32
    %1 = arith.extui %0 : i1 to i32
    %c0_i32 = arith.constant 0 : i32
    %2 = arith.cmpi ne, %1, %c0_i32 : i32
    scf.if %2 {
      %cst = arith.constant 0.000000e+00 : f32
      %9 = vector.broadcast %cst : f32 to vector<16x1xf32>
      %c0 = arith.constant 0 : index
      %c0_3 = arith.constant 0 : index
      %10 = vector.load %arg10[%c0, %c0_3] : memref<16x1xf32, #tpu.memory_space<vmem>>, vector<16x1xf32>
      tpu.vector_store %arg10[%c0, %c0_3], %9 {strides = array<i32>} : memref<16x1xf32, #tpu.memory_space<vmem>>, vector<16x1xf32>,
    } else {
    }
    %3 = arith.cmpi sge, %arg1, %arg0 : i32
    %4 = arith.extui %3 : i1 to i32
    %c0_i32_0 = arith.constant 0 : i32
    %5 = arith.cmpi ne, %4, %c0_i32_0 : i32
    scf.if %5 {
      %c0 = arith.constant 0 : index
      %c0_3 = arith.constant 0 : index
      %9 = vector.load %arg3[%c0, %c0_3] : memref<16x32xf32, #tpu.memory_space<vmem>>, vector<16x32xf32>
      %c0_4 = arith.constant 0 : index
      %c0_5 = arith.constant 0 : index
      %10 = vector.load %arg4[%c0_4, %c0_5] : memref<16x32xf32, #tpu.memory_space<vmem>>, vector<16x32xf32>
      %cst = arith.constant dense<0.000000e+00> : vector<16x16xf32>
      %11 = tpu.matmul %9, %10, %cst {dimension_numbers = #tpu.dot_dimension_numbers<[1], [1], [0], [0], [0, 0, 1, 0], [], []>} : vector<16x32xf32>, vector<16x32xf32>, vector<16x16xf32> -> vector<16x16xf32>
      %c0_6 = arith.constant 0 : index
      %c0_7 = arith.constant 0 : index
      %12 = vector.load %arg5[%c0_6, %c0_7] : memref<16x1xf32, #tpu.memory_space<vmem>>, vector<16x1xf32>
      %c0_8 = arith.constant 0 : index
      %c0_9 = arith.constant 0 : index
      %13 = vector.load %arg6[%c0_8, %c0_9] : memref<1x16xf32, #tpu.memory_space<vmem>>, vector<1x16xf32>
      %14 = vector.broadcast %12 : vector<16x1xf32> to vector<16x16xf32>
      %15 = vector.broadcast %13 : vector<1x16xf32> to vector<16x16xf32>
      %16 = arith.addf %14, %15 : vector<16x16xf32>
      %cst_10 = arith.constant 2.000000e+00 : f32
      %17 = vector.broadcast %cst_10 : f32 to vector<16x16xf32>
      %18 = arith.mulf %17, %11 : vector<16x16xf32>
      %19 = arith.subf %16, %18 : vector<16x16xf32>
      %cst_11 = arith.constant 0.000000e+00 : f32
      %20 = vector.broadcast %cst_11 : f32 to vector<16x16xf32>
      %21 = arith.maximumf %19, %20 : vector<16x16xf32>
      %c0_12 = arith.constant 0 : index
      %c4 = arith.constant 4 : index
      %22 = memref.load %arg2[%c0_12, %c4] : memref<1x5xf32, #tpu.memory_space<smem>>
      %23 = vector.broadcast %22 : f32 to vector<16x16xf32>
      %24 = arith.mulf %21, %23 : vector<16x16xf32>
      %25 = math.exp %24 : vector<16x16xf32>
      %26 = arith.mulf %25, %25 : vector<16x16xf32>
      %27 = arith.addf %25, %26 : vector<16x16xf32>
      %28 = arith.mulf %26, %26 : vector<16x16xf32>
      %29 = arith.addf %27, %28 : vector<16x16xf32>
      %30 = arith.mulf %28, %28 : vector<16x16xf32>
      %31 = arith.addf %29, %30 : vector<16x16xf32>
      %32 = arith.mulf %30, %30 : vector<16x16xf32>
      %33 = arith.addf %31, %32 : vector<16x16xf32>
      %c0_13 = arith.constant 0 : index
      %c0_14 = arith.constant 0 : index
      %34 = vector.load %arg8[%c0_13, %c0_14] : memref<1x16xf32, #tpu.memory_space<vmem>>, vector<1x16xf32>
      %cst_15 = arith.constant dense<0.000000e+00> : vector<16x1xf32>
      %35 = tpu.matmul %33, %34, %cst_15 {dimension_numbers = #tpu.dot_dimension_numbers<[1], [1], [0], [0], [0, 0, 1, 0], [], []>} : vector<16x16xf32>, vector<1x16xf32>, vector<16x1xf32> -> vector<16x1xf32>
      %36 = arith.cmpi sgt, %arg1, %arg0 : i32
      %cst_16 = arith.constant 2.000000e+00 : f32
      %cst_17 = arith.constant 1.000000e+00 : f32
      %37 = arith.select %36, %cst_16, %cst_17 : f32
      %c0_18 = arith.constant 0 : index
      %c0_19 = arith.constant 0 : index
      %38 = vector.load %arg10[%c0_18, %c0_19] : memref<16x1xf32, #tpu.memory_space<vmem>>, vector<16x1xf32>
      %39 = vector.broadcast %37 : f32 to vector<16x1xf32>
      %40 = arith.mulf %39, %35 : vector<16x1xf32>
      %41 = arith.addf %38, %40 : vector<16x1xf32>
      %c0_20 = arith.constant 0 : index
      %c0_21 = arith.constant 0 : index
      %42 = vector.load %arg10[%c0_20, %c0_21] : memref<16x1xf32, #tpu.memory_space<vmem>>, vector<16x1xf32>
      tpu.vector_store %arg10[%c0_20, %c0_21], %41 {strides = array<i32>} : memref<16x1xf32, #tpu.memory_space<vmem>>, vector<16x1xf32>,
    } else {
    }
    %c0_i32_1 = arith.constant 0 : i32
    %6 = arith.cmpi eq, %arg1, %c0_i32_1 : i32
    %7 = arith.extui %6 : i1 to i32
    %c0_i32_2 = arith.constant 0 : i32
    %8 = arith.cmpi ne, %7, %c0_i32_2 : i32
    scf.if %8 {
      %c0 = arith.constant 0 : index
      %c0_3 = arith.constant 0 : index
      %9 = vector.load %arg7[%c0, %c0_3] : memref<16x1xf32, #tpu.memory_space<vmem>>, vector<16x1xf32>
      %c0_4 = arith.constant 0 : index
      %c0_5 = arith.constant 0 : index
      %10 = vector.load %arg10[%c0_4, %c0_5] : memref<16x1xf32, #tpu.memory_space<vmem>>, vector<16x1xf32>
      %11 = arith.mulf %9, %10 : vector<16x1xf32>
      %12 = vector.shape_cast %11 : vector<16x1xf32> to vector<1x16x1xf32>
      %cst = arith.constant dense<0.000000e+00> : vector<1xf32>
      %13 = vector.multi_reduction <add>, %12, %cst [1, 2] : vector<1x16x1xf32> to vector<1xf32>
      %14 = vector.shape_cast %13 : vector<1xf32> to vector<1x1x1xf32>
      %15 = vector.extract %14[0, 0, 0] : f32 from vector<1x1x1xf32>
      %cst_6 = arith.constant 0.000000e+00 : f32
      %16 = vector.broadcast %cst_6 : f32 to vector<8x128xf32>
      %17 = vector.broadcast %15 : f32 to vector<8x128xf32>
      %18 = arith.addf %16, %17 : vector<8x128xf32>
      %c0_7 = arith.constant 0 : index
      %c0_8 = arith.constant 0 : index
      %19 = vector.load %arg9[%c0_7, %c0_8] : memref<8x128xf32, #tpu.memory_space<vmem>>, vector<8x128xf32>
      tpu.vector_store %arg9[%c0_7, %c0_8], %18 {strides = array<i32>} : memref<8x128xf32, #tpu.memory_space<vmem>>, vector<8x128xf32>,
    } else {
    }
    return
  }
  func.func @transform_0(%arg0: i32, %arg1: i32) -> (i32, i32) {
    %c0_i32 = arith.constant 0 : i32
    %c0_i32_0 = arith.constant 0 : i32
    %c0_i32_1 = arith.constant 0 : i32
    return %c0_i32, %c0_i32_0 : i32, i32
  }
  func.func @transform_1(%arg0: i32, %arg1: i32) -> (i32, i32) {
    %c0_i32 = arith.constant 0 : i32
    %c0_i32_0 = arith.constant 0 : i32
    return %arg0, %c0_i32 : i32, i32
  }
  func.func @transform_2(%arg0: i32, %arg1: i32) -> (i32, i32) {
    %c0_i32 = arith.constant 0 : i32
    %c0_i32_0 = arith.constant 0 : i32
    return %arg1, %c0_i32 : i32, i32
  }
  func.func @transform_3(%arg0: i32, %arg1: i32) -> (i32, i32) {
    %c0_i32 = arith.constant 0 : i32
    %c0_i32_0 = arith.constant 0 : i32
    return %arg0, %c0_i32 : i32, i32
  }
  func.func @transform_4(%arg0: i32, %arg1: i32) -> (i32, i32) {
    %c0_i32 = arith.constant 0 : i32
    %c0_i32_0 = arith.constant 0 : i32
    return %c0_i32, %arg1 : i32, i32
  }
  func.func @transform_5(%arg0: i32, %arg1: i32) -> (i32, i32) {
    %c0_i32 = arith.constant 0 : i32
    %c0_i32_0 = arith.constant 0 : i32
    return %arg0, %c0_i32 : i32, i32
  }
  func.func @transform_6(%arg0: i32, %arg1: i32) -> (i32, i32) {
    %c0_i32 = arith.constant 0 : i32
    %c0_i32_0 = arith.constant 0 : i32
    return %c0_i32, %arg1 : i32, i32
  }
  func.func @transform_7(%arg0: i32, %arg1: i32) -> (i32, i32) {
    %c0_i32 = arith.constant 0 : i32
    %c0_i32_0 = arith.constant 0 : i32
    return %arg0, %c0_i32 : i32, i32
  }
}

</mosaic_0001>

<llo_original>
// kernel: tpu_custom_call.1
$region0: #{tpu_custom_call.1}
  #allocation0 [shape = 'u32[]', space=smem, size = 0x4, offset = 0x4, fixed_abs, tag = 'smem constant byte address 0x4 - core index']
  #allocation1 [shape = 'u32[144,128]{1,0:T(1,128)}', space=vmem, size = 0x12000, scoped, tag = 'internal scratch']
  #allocation2 [shape = 'f32[16,1]{1,0:T(8,128)}', space=vmem, size = 0x2000, scoped, tag = 'scratch operand']
  %s0 = inlined_call_operand.hbm [shape: f32[1,5], index: 0, kind: input, shape index: {}]
  %s1 = inlined_call_operand.hbm [shape: f32[16,32], index: 1, kind: input, shape index: {}]
  %s2 = inlined_call_operand.hbm [shape: f32[16,32], index: 2, kind: input, shape index: {}]
  %s3 = inlined_call_operand.hbm [shape: f32[16,1], index: 3, kind: input, shape index: {}]
  %s4 = inlined_call_operand.hbm [shape: f32[1,16], index: 4, kind: input, shape index: {}]
  %s5 = inlined_call_operand.hbm [shape: f32[16,1], index: 5, kind: input, shape index: {}]
  %s6 = inlined_call_operand.hbm [shape: f32[1,16], index: 6, kind: input, shape index: {}]
  %s7 = inlined_call_operand.hbm [shape: f32[8,128], index: 7, kind: output, shape index: {}]
  %s8 = sld [smem:[#allocation0]]
  $region78: #{tpu_custom_call.1} parent=0
    _
  %s10 = ssub.s32 1, %s8
  %s11 = scalar_select 0, %s10, %s8
  $region1: #{tpu_custom_call.1} parent=0
    #allocation3 [shape = 'u8[512]{0}', space=smem, size = 0x200, scoped, tag = 'input window, operand 0, single buffered']
    #allocation4 [shape = 's32[1]{0}', space=sflag, size = 0x4, scoped, tag = 'scoped memory for tpu_custom_call.1']
    #allocation5 [shape = 's32[1]{0}', space=sflag, size = 0x4, scoped, tag = 'scoped memory for tpu_custom_call.1']
    #allocation6 [shape = 's32[1]{0}', space=sflag, size = 0x4, scoped, tag = 'scoped memory for tpu_custom_call.1']
    #allocation7 [shape = 'u8[8192]{0}', space=vmem, size = 0x2000, scoped, tag = 'input window, operand 1, single buffered']
    #allocation8 [shape = 'u8[8192]{0}', space=vmem, size = 0x2000, scoped, tag = 'input window, operand 2, single buffered']
    #allocation9 [shape = 's32[1]{0}', space=sflag, size = 0x4, scoped, tag = 'scoped memory for tpu_custom_call.1']
    #allocation10 [shape = 'u8[8192]{0}', space=vmem, size = 0x2000, scoped, tag = 'input window, operand 3, single buffered']
    #allocation11 [shape = 'u8[512]{0}', space=vmem, size = 0x400, scoped, tag = 'input window, operand 4, single buffered']
    #allocation12 [shape = 's32[1]{0}', space=sflag, size = 0x4, scoped, tag = 'scoped memory for tpu_custom_call.1']
    #allocation13 [shape = 'u8[8192]{0}', space=vmem, size = 0x2000, scoped, tag = 'input window, operand 5, single buffered']
    #allocation14 [shape = 'u8[512]{0}', space=vmem, size = 0x400, scoped, tag = 'input window, operand 6, single buffered']
    #allocation15 [shape = 's32[1]{0}', space=sflag, size = 0x4, scoped, tag = 'scoped memory for tpu_custom_call.1']
    #allocation16 [shape = 'u8[4096]{0}', space=vmem, size = 0x1000, scoped, tag = 'output window, operand 0, single buffered']
    %12 = vsyncpa [#allocation6], 0
    %13 = vsyncpa [#allocation4], 0
    %14 = vsyncpa [#allocation9], 0
    %15 = vsyncpa [#allocation12], 0
    %16 = vsyncpa [#allocation15], 0
    %17 = vsyncpa [#allocation5], 0
    // Predicated region
    $region2: #{tpu_custom_call.1} parent=1 // pred_check
      _
    $region3: #{tpu_custom_call.1} parent=1 // pred_check_branch
      %19 = sbr.rel (0) target = $region5
    $region4: #{tpu_custom_call.1} parent=1 // pred_region
      %s21 = ssub.s32 16, 16
      %22 = vsyncadd [#allocation6], %s21
      %25 = dma.hbm_to_smem %s0, 16, [#allocation3], [#allocation6]
    $region5: #{tpu_custom_call.1} parent=1 // pred_fallthru
      _
    // Predicated region
    $region6: #{tpu_custom_call.1} parent=1 // pred_check
      _
    $region7: #{tpu_custom_call.1} parent=1 // pred_check_branch
      %27 = sbr.rel (0) target = $region9
    $region8: #{tpu_custom_call.1} parent=1 // pred_region
      %s29 = ssub.s32 256, 256
      %30 = vsyncadd [#allocation4], %s29
      %s31 = sshll.u32 [#allocation7], 4
      %s32 = int_to_ptr.vmem [resolvable:$true] %s31
      %37 = dma.hbm_to_vmem [thread:$0]  %s1, 256, %s32, [#allocation4], 128, 128, 8
    $region9: #{tpu_custom_call.1} parent=1 // pred_fallthru
      _
    // Predicated region
    $region10: #{tpu_custom_call.1} parent=1 // pred_check
      _
    $region11: #{tpu_custom_call.1} parent=1 // pred_check_branch
      %39 = sbr.rel (0) target = $region13
    $region12: #{tpu_custom_call.1} parent=1 // pred_region
      %s41 = ssub.s32 256, 256
      %42 = vsyncadd [#allocation9], %s41
      %s43 = sshll.u32 [#allocation8], 4
      %s44 = int_to_ptr.vmem [resolvable:$true] %s43
      %49 = dma.hbm_to_vmem [thread:$0]  %s2, 256, %s44, [#allocation9], 128, 128, 8
    $region13: #{tpu_custom_call.1} parent=1 // pred_fallthru
      _
    // Predicated region
    $region14: #{tpu_custom_call.1} parent=1 // pred_check
      _
    $region15: #{tpu_custom_call.1} parent=1 // pred_check_branch
      %51 = sbr.rel (0) target = $region17
    $region16: #{tpu_custom_call.1} parent=1 // pred_region
      %s53 = ssub.s32 256, 256
      %54 = vsyncadd [#allocation9], %s53
      %s55 = sshll.u32 [#allocation10], 4
      %s56 = int_to_ptr.vmem [resolvable:$true] %s55
      %61 = dma.hbm_to_vmem [thread:$0]  %s3, 256, %s56, [#allocation9], 128, 128, 8
    $region17: #{tpu_custom_call.1} parent=1 // pred_fallthru
      _
    // Predicated region
    $region18: #{tpu_custom_call.1} parent=1 // pred_check
      _
    $region19: #{tpu_custom_call.1} parent=1 // pred_check_branch
      %63 = sbr.rel (0) target = $region21
    $region20: #{tpu_custom_call.1} parent=1 // pred_region
      %s65 = ssub.s32 16, 16
      %66 = vsyncadd [#allocation12], %s65
      %s68 = sshll.u32 [#allocation11], 4
      %s69 = int_to_ptr.vmem [resolvable:$true] %s68
      %71 = dma.hbm_to_vmem [thread:$0]  %s4, 16, %s69, [#allocation12]
    $region21: #{tpu_custom_call.1} parent=1 // pred_fallthru
      _
    // Predicated region
    $region22: #{tpu_custom_call.1} parent=1 // pred_check
      _
    $region23: #{tpu_custom_call.1} parent=1 // pred_check_branch
      %73 = sbr.rel (0) target = $region25
    $region24: #{tpu_custom_call.1} parent=1 // pred_region
      %s75 = ssub.s32 256, 256
      %76 = vsyncadd [#allocation12], %s75
      %s77 = sshll.u32 [#allocation13], 4
      %s78 = int_to_ptr.vmem [resolvable:$true] %s77
      %83 = dma.hbm_to_vmem [thread:$0]  %s5, 256, %s78, [#allocation12], 128, 128, 8
    $region25: #{tpu_custom_call.1} parent=1 // pred_fallthru
      _
    // Predicated region
    $region26: #{tpu_custom_call.1} parent=1 // pred_check
      _
    $region27: #{tpu_custom_call.1} parent=1 // pred_check_branch
      %85 = sbr.rel (0) target = $region29
    $region28: #{tpu_custom_call.1} parent=1 // pred_region
      %s87 = ssub.s32 16, 16
      %88 = vsyncadd [#allocation15], %s87
      %s90 = sshll.u32 [#allocation14], 4
      %s91 = int_to_ptr.vmem [resolvable:$true] %s90
      %93 = dma.hbm_to_vmem [thread:$0]  %s6, 16, %s91, [#allocation15]
    $region29: #{tpu_custom_call.1} parent=1 // pred_fallthru
      _
    // Predicated region
    $region30: #{tpu_custom_call.1} parent=1 // pred_check
      _
    $region31: #{tpu_custom_call.1} parent=1 // pred_check_branch
      %95 = sbr.rel (0) target = $region33
    $region32: #{tpu_custom_call.1} parent=1 // pred_region
      %96 = dma.done [#allocation6], 16
    $region33: #{tpu_custom_call.1} parent=1 // pred_fallthru
      _
    // Predicated region
    $region34: #{tpu_custom_call.1} parent=1 // pred_check
      _
    $region35: #{tpu_custom_call.1} parent=1 // pred_check_branch
      %98 = sbr.rel (0) target = $region37
    $region36: #{tpu_custom_call.1} parent=1 // pred_region
      %99 = dma.done [#allocation4], 256
    $region37: #{tpu_custom_call.1} parent=1 // pred_fallthru
      _
    // Predicated region
    $region38: #{tpu_custom_call.1} parent=1 // pred_check
      _
    $region39: #{tpu_custom_call.1} parent=1 // pred_check_branch
      %101 = sbr.rel (0) target = $region41
    $region40: #{tpu_custom_call.1} parent=1 // pred_region
      %102 = dma.done [#allocation9], 256
    $region41: #{tpu_custom_call.1} parent=1 // pred_fallthru
      _
    // Predicated region
    $region42: #{tpu_custom_call.1} parent=1 // pred_check
      _
    $region43: #{tpu_custom_call.1} parent=1 // pred_check_branch
      %104 = sbr.rel (0) target = $region45
    $region44: #{tpu_custom_call.1} parent=1 // pred_region
      %105 = dma.done [#allocation9], 256
    $region45: #{tpu_custom_call.1} parent=1 // pred_fallthru
      _
    // Predicated region
    $region46: #{tpu_custom_call.1} parent=1 // pred_check
      _
    $region47: #{tpu_custom_call.1} parent=1 // pred_check_branch
      %107 = sbr.rel (0) target = $region49
    $region48: #{tpu_custom_call.1} parent=1 // pred_region
      %108 = dma.done [#allocation12], 16
    $region49: #{tpu_custom_call.1} parent=1 // pred_fallthru
      _
    // Predicated region
    $region50: #{tpu_custom_call.1} parent=1 // pred_check
      _
    $region51: #{tpu_custom_call.1} parent=1 // pred_check_branch
      %110 = sbr.rel (0) target = $region53
    $region52: #{tpu_custom_call.1} parent=1 // pred_region
      %111 = dma.done [#allocation12], 256
    $region53: #{tpu_custom_call.1} parent=1 // pred_fallthru
      _
    // Predicated region
    $region54: #{tpu_custom_call.1} parent=1 // pred_check
      _
    $region55: #{tpu_custom_call.1} parent=1 // pred_check_branch
      %113 = sbr.rel (0) target = $region57
    $region56: #{tpu_custom_call.1} parent=1 // pred_region
      %114 = dma.done [#allocation15], 16
    $region57: #{tpu_custom_call.1} parent=1 // pred_fallthru
      _
    %115 = sfence
    %p116 = scmp.eq.s32.totalorder 0, 0
    // Predicated region
    $region58: #{tpu_custom_call.1} parent=1 // pred_check
      %p117 = pneg %p116
    $region59: #{tpu_custom_call.1} parent=1 // pred_check_branch
      %119 = sbr.rel (%p117) target = $region61
    $region60: #{tpu_custom_call.1} parent=1 // pred_region
      %vm120 = vcmask 7168
      %121 = vst.msk [vmem:[#allocation2] sm:$0xff] %vm120, 0.0
      %122 = vst.msk [vmem:[#allocation2 + $0x8] sm:$0xff] %vm120, 0.0
    $region61: #{tpu_custom_call.1} parent=1 // pred_fallthru
      _
    %p123 = scmp.ge.s32.totalorder 0, 0
    // Predicated region
    $region62: #{tpu_custom_call.1} parent=1 // pred_check
      %p124 = pneg %p123
    $region63: #{tpu_custom_call.1} parent=1 // pred_check_branch
      %126 = sbr.rel (%p124) target = $region65
    $region64: #{tpu_custom_call.1} parent=1 // pred_region
      %v127 = vld [vmem:[#allocation7] sm:$0xff]
      %v128 = vld [vmem:[#allocation7 + $0x8] sm:$0xff]
      %v129 = vld [vmem:[#allocation8] sm:$0xff]
      %v130 = vld [vmem:[#allocation8 + $0x8] sm:$0xff]
      %vm131 = vcmask 261120
      %v133 = vsel %vm131, %v127, 0
      %v136 = vsel %vm131, %v128, 0
      %v139 = vsel %vm131, %v129, 0
      %v142 = vsel %vm131, %v130, 0
      %144 = vmatprep.subr.mxu0 0.0
      %145 = vmatpush1.xpose.msra.mxu0 %v139
      %146 = vmatprep.subr.mxu0 0.0
      %147 = vmatpush1.xpose.msra.mxu0 %v142
      %148 = vmatprep.subr.mxu0 0.0
      %149 = vmatpush1.xpose.msra.mxu0 0.0
      %150 = vmatprep.subr.mxu0 0.0
      %151 = vmatpush1.xpose.msra.mxu0 0.0
      %152 = vmatprep.subr.mxu0 0.0
      %153 = vmatpush1.xpose.msra.mxu0 0.0
      %154 = vmatprep.subr.mxu0 0.0
      %155 = vmatpush1.xpose.msra.mxu0 0.0
      %156 = vmatprep.subr.mxu0 0.0
      %157 = vmatpush1.xpose.msra.mxu0 0.0
      %158 = vmatprep.subr.mxu0 0.0
      %159 = vmatpush1.xpose.msra.mxu0 0.0
      %160 = vmatprep.subr.mxu0 0.0
      %161 = vmatpush1.xpose.msra.mxu0 0.0
      %162 = vmatprep.subr.mxu0 0.0
      %163 = vmatpush1.xpose.msra.mxu0 0.0
      %164 = vmatprep.subr.mxu0 0.0
      %165 = vmatpush1.xpose.msra.mxu0 0.0
      %166 = vmatprep.subr.mxu0 0.0
      %167 = vmatpush1.xpose.msra.mxu0 0.0
      %168 = vmatprep.subr.mxu0 0.0
      %169 = vmatpush1.xpose.msra.mxu0 0.0
      %170 = vmatprep.subr.mxu0 0.0
      %171 = vmatpush1.xpose.msra.mxu0 0.0
      %172 = vmatprep.subr.mxu0 0.0
      %173 = vmatpush1.xpose.msra.mxu0 0.0
      %174 = vmatprep.subr.mxu0 0.0
      %175 = vmatpush1.xpose.msra.mxu0 0.0
      %176 = vmatprep.subr.mxu0 0.0
      %177 = vmatpush1.xpose.msra.mxu0 0.0
      %178 = vmatprep.subr.mxu0 0.0
      %179 = vmatpush1.xpose.msra.mxu0 0.0
      %180 = vmatprep.subr.mxu0 0.0
      %181 = vmatpush1.xpose.msra.mxu0 0.0
      %182 = vmatprep.subr.mxu0 0.0
      %183 = vmatpush1.xpose.msra.mxu0 0.0
      %184 = vmatprep.subr.mxu0 0.0
      %185 = vmatpush1.xpose.msra.mxu0 0.0
      %186 = vmatprep.subr.mxu0 0.0
      %187 = vmatpush1.xpose.msra.mxu0 0.0
      %188 = vmatprep.subr.mxu0 0.0
      %189 = vmatpush1.xpose.msra.mxu0 0.0
      %190 = vmatprep.subr.mxu0 0.0
      %191 = vmatpush1.xpose.msra.mxu0 0.0
      %192 = vmatprep.subr.mxu0 0.0
      %193 = vmatpush1.xpose.msra.mxu0 0.0
      %194 = vmatprep.subr.mxu0 0.0
      %195 = vmatpush1.xpose.msra.mxu0 0.0
      %196 = vmatprep.subr.mxu0 0.0
      %197 = vmatpush1.xpose.msra.mxu0 0.0
      %198 = vmatprep.subr.mxu0 0.0
      %199 = vmatpush1.xpose.msra.mxu0 0.0
      %200 = vmatprep.subr.mxu0 0.0
      %201 = vmatpush1.xpose.msra.mxu0 0.0
      %202 = vmatprep.subr.mxu0 0.0
      %203 = vmatpush1.xpose.msra.mxu0 0.0
      %204 = vmatprep.subr.mxu0 0.0
      %205 = vmatpush1.xpose.msra.mxu0 0.0
      %206 = vmatprep.subr.mxu0 0.0
      %207 = vmatpush1.xpose.msra.mxu0 0.0
      %208 = vmatprep.mubr.f32.mxu0 0.0
      %209 = vmatmul.mubr.f32.gmra.mrb[0].mxu0 %v133
      %v210 = vpop.f32.mrb[0].mxu0
      %v211 = vadd.f32 0.0, %v210
      %v212 = vpop.f32.mrb[0].mxu0
      %213 = vmatprep.mubr.f32.mxu0 0.0
      %214 = vmatmul.mubr.f32.gmra.mrb[0].mxu0 %v136
      %v215 = vpop.f32.mrb[0].mxu0
      %v216 = vadd.f32 0.0, %v215
      %v217 = vpop.f32.mrb[0].mxu0
      %218 = vdwg.mxu0
      %v219 = vld [vmem:[#allocation10] sm:$0xff]
      %v220 = vld [vmem:[#allocation10 + $0x8] sm:$0xff]
      %v221 = vld [vmem:[#allocation11] sm:$0x1]
      %223 = vset.pattern.permute.xlu0 0
      %224 = vperm.xlu0 %223, %v219
      %v225 = vpop.permute.xlu0 %224
      %228 = vset.pattern.permute.xlu0 0
      %229 = vperm.xlu0 %228, %v220
      %v230 = vpop.permute.xlu0 %229
      %v233 = vlaneseq
      %v234 = vshrl.u32 %v233, 7
      %v235 = vsub.s32 0, %v234
      %v236 = vrot.slane %v221, %v235
      %v238 = vadd.f32 %v225, %v236
      %v239 = vadd.f32 %v230, %v236
      %v240 = vmul.f32 %v211, 2.0
      %v241 = vmul.f32 %v216, 2.0
      %v242 = vsub.f32 %v238, %v240
      %v243 = vsub.f32 %v239, %v241
      %v244 = vmax.f32 %v242, 0.0
      %v245 = vmax.f32 %v243, 0.0
      %s246 = sld [smem:[#allocation3 + $0x4]]
      %v247 = vstv %s246
      %v248 = vmul.f32 %v244, %v247
      %v249 = vmul.f32 %v245, %v247
      %v250 = vmul.f32 %v248, 1.442695
      %v251 = vpow.pop %v250
      %v252 = vmul.f32 %v249, 1.442695
      %v253 = vpow.pop %v252
      %v254 = vmul.f32 %v251, %v251
      %v255 = vmul.f32 %v253, %v253
      %v256 = vadd.f32 %v251, %v254
      %v257 = vadd.f32 %v253, %v255
      %v258 = vmul.f32 %v254, %v254
      %v259 = vmul.f32 %v255, %v255
      %v260 = vadd.f32 %v256, %v258
      %v261 = vadd.f32 %v257, %v259
      %v262 = vmul.f32 %v258, %v258
      %v263 = vmul.f32 %v259, %v259
      %v264 = vadd.f32 %v260, %v262
      %v265 = vadd.f32 %v261, %v263
      %v266 = vmul.f32 %v262, %v262
      %v267 = vmul.f32 %v263, %v263
      %v268 = vadd.f32 %v264, %v266
      %v269 = vadd.f32 %v265, %v267
      %v270 = vld [vmem:[#allocation14] sm:$0x1]
      %v272 = vlaneseq
      %v273 = vshrl.u32 %v272, 7
      %v274 = vsub.s32 0, %v273
      %v275 = vrot.slane %v270, %v274
      %v277 = vmul.f32 %v268, %v275
      %v278 = vmul.f32 %v269, %v275
      %vm279 = vcmask 130048
      %v280 = vsel %vm279, %v277, 0.0
      %281 = vadd.xlane.f32.xlu0 %v280
      %v282 = vpop.xlane.xlu0 %281
      %v283 = vsel %vm279, %v278, 0.0
      %284 = vadd.xlane.f32.xlu0 %v283
      %v285 = vpop.xlane.xlu0 %284
      %p286 = scmp.gt.s32.totalorder 0, 0
      %s287 = scalar_select %p286, 2.0, 1.0
      %v288 = vld [vmem:[#allocation2] sm:$0xff]
      %v289 = vld [vmem:[#allocation2 + $0x8] sm:$0xff]
      %v290 = vstv %s287
      %v291 = vmul.f32 %v290, %v282
      %v292 = vmul.f32 %v290, %v285
      %v293 = vadd.f32 %v288, %v291
      %v294 = vadd.f32 %v289, %v292
      %vm295 = vcmask 7168
      %296 = vst.msk [vmem:[#allocation2] sm:$0xff] %vm295, %v293
      %297 = vst.msk [vmem:[#allocation2 + $0x8] sm:$0xff] %vm295, %v294
    $region65: #{tpu_custom_call.1} parent=1 // pred_fallthru
      _
    %p298 = scmp.eq.s32.totalorder 0, 0
    // Predicated region
    $region66: #{tpu_custom_call.1} parent=1 // pred_check
      %p299 = pneg %p298
    $region67: #{tpu_custom_call.1} parent=1 // pred_check_branch
      %301 = sbr.rel (%p299) target = $region69
    $region68: #{tpu_custom_call.1} parent=1 // pred_region
      %v302 = vld [vmem:[#allocation13] sm:$0xff]
      %v303 = vld [vmem:[#allocation13 + $0x8] sm:$0xff]
      %v304 = vld [vmem:[#allocation2] sm:$0xff]
      %v305 = vld [vmem:[#allocation2 + $0x8] sm:$0xff]
      %v306 = vmul.f32 %v302, %v304
      %v307 = vmul.f32 %v303, %v305
      %vm308 = vcmask 7168
      %v309 = vsel %vm308, %v306, 0.0
      %v310 = vsel %vm308, %v307, 0.0
      %v311 = vadd.f32 %v309, %v310
      %312 = vadd.xlane.f32.xlu0 %v311
      %v313 = vpop.xlane.xlu0 %312
      %v314 = vrot.slane %v313, 4
      %v315 = vadd.f32 %v313, %v314
      %v316 = vrot.slane %v315, 2
      %v317 = vadd.f32 %v315, %v316
      %v318 = vrot.slane %v317, 1
      %v319 = vadd.f32 %v317, %v318
      %s320 = vtos %v319
      %v321 = vstv %s320
      %v322 = vadd.f32 %v321, 0.0
      %323 = vst [vmem:[#allocation16] sm:$0xff] %v322
    $region69: #{tpu_custom_call.1} parent=1 // pred_fallthru
      _
    // Predicated region
    $region70: #{tpu_custom_call.1} parent=1 // pred_check
      _
    $region71: #{tpu_custom_call.1} parent=1 // pred_check_branch
      %325 = sbr.rel (0) target = $region73
    $region72: #{tpu_custom_call.1} parent=1 // pred_region
      %s327 = ssub.s32 128, 128
      %328 = vsyncadd [#allocation5], %s327
      %s330 = sshll.u32 [#allocation16], 4
      %s331 = int_to_ptr.vmem [resolvable:$true] %s330
      %333 = dma.vmem_to_hbm [thread:$0]  %s331, 128, %s7, [#allocation5]
    $region73: #{tpu_custom_call.1} parent=1 // pred_fallthru
      _
    // Predicated region
    $region74: #{tpu_custom_call.1} parent=1 // pred_check
      _
    $region75: #{tpu_custom_call.1} parent=1 // pred_check_branch
      %335 = sbr.rel (0) target = $region77
    $region76: #{tpu_custom_call.1} parent=1 // pred_region
      %336 = dma.done [#allocation5], 128
    $region77: #{tpu_custom_call.1} parent=1 // pred_fallthru
      _
    %337 = vsyncpa [#allocation4], 1
    %338 = vsyncpa [#allocation9], 1
    %339 = vsyncpa [#allocation12], 1
    %340 = vsyncpa [#allocation15], 1
    %341 = vsyncpa [#allocation5], 1
    %342 = vsyncpa [#allocation6], 1

</llo_original>
